<compile_context>
chip_gen: v7x
topology: tpu7x:2x2x1
jax: 0.10.0
libtpu: 0.0.40
codegen_flags: <defaults>
</compile_context>

<pallas_src>
import functools

import jax
import jax.numpy as jnp
from jax.experimental import pallas as pl
from jax.experimental.pallas import tpu as pltpu


_CHUNK = 256      # in-kernel row sub-chunk (packed rows); multiple of 8 sublanes
_TM = 1024        # default row tile (packed rows) handed to each grid step
_MAX_PACK = 8     # max original rows packed per vreg row


def _mlp_kernel(n_layers, chunk, *refs):
    """refs = (x_ref, w0, b0, ..., w_{L-1}, b_{L-1}, o_ref).

    All weights are row-packed (block-diagonal) by the wrapper:
      w_l : (P*in_l, P*out_l)    b_l : (1, P*out_l)
    x_ref is (tm, P*in_dim) and o_ref is (tm, P*out_dim); with P = 128//in_dim
    the input block is lane-dense (last dim == 128) and the matmul K dim is 128.
    """
    x_ref = refs[0]
    o_ref = refs[-1]
    wb = refs[1:-1]

    # Hoisted out of the chunk loop: each weight/bias is loaded + cast once.
    ws = [wb[2 * l][...].astype(jnp.float32) for l in range(n_layers)]
    bs = [wb[2 * l + 1][...].astype(jnp.float32) for l in range(n_layers)]

    tm = x_ref.shape[0]
    n_chunks = tm // chunk

    def compute_chunk(r0):
        h = x_ref[pl.ds(r0, chunk), :].astype(jnp.float32)
        for l in range(n_layers):
            h = jnp.dot(h, ws[l], preferred_element_type=jnp.float32) + bs[l]
            if l < n_layers - 1:
                h = jnp.maximum(h, 0.0)
        o_ref[pl.ds(r0, chunk), :] = h.astype(o_ref.dtype)

    if n_chunks == 1:
        compute_chunk(0)
    else:
        # fori_loop (not a fully-unrolled static Python loop) bounds vreg live
        # ranges across chunks; modest unroll keeps the scheduler effective.
        def body(c, carry):
            compute_chunk(pl.multiple_of(c * chunk, chunk))
            return carry

        jax.lax.fori_loop(0, n_chunks, body, None, unroll=min(2, n_chunks))


def _pack_factor(n_rows, in_dim, max_pack=_MAX_PACK):
    """Rows packed per vreg row.  Target: P * in_dim == 128 (lane-dense input)."""
    if in_dim <= 0 or in_dim > 128 or 128 % in_dim != 0:
        return 1
    p = min(max_pack, 128 // in_dim)
    while p > 1 and n_rows % p != 0:
        p -= 1
    return p


def mlp_forward(x, weights, biases, *, tm=_TM, chunk=_CHUNK):
    """Applies the MLP to x of shape (..., in_dim).

    weights[l]: (in_features_l, out_features_l)   biases[l]: (out_features_l,)
    """
    assert len(weights) == len(biases) and len(weights) >= 1
    n_layers = len(weights)
    lead_shape = x.shape[:-1]
    in_dim = x.shape[-1]
    out_dim = weights[-1].shape[1]

    xf = x.reshape(-1, in_dim)
    n_rows = xf.shape[0]

    # --- row packing: P rows per vreg row (free contiguous reshape) ----------
    p = _pack_factor(n_rows, in_dim)
    n_packed = n_rows // p
    xp = xf.reshape(n_packed, p * in_dim)

    packed_w, packed_b = [], []
    for w, b in zip(weights, biases):
        wp = w if p == 1 else jnp.kron(jnp.eye(p, dtype=w.dtype), w)  # block-diag
        packed_w.append(wp)
        packed_b.append(jnp.tile(b, p).reshape(1, -1))

    # --- tiling ---------------------------------------------------------------
    tm = max(chunk, (int(tm) // chunk) * chunk)
    rows_rounded = pl.cdiv(n_packed, chunk) * chunk
    # Cap the tile so the 1-D grid has >= 2 steps whenever there are >= 2 chunks
    # of rows: with ("parallel",) semantics v7x's two TensorCores both get work.
    two_way = max(chunk, pl.cdiv(n_packed, 2 * chunk) * chunk)
    tm_eff = min(tm, two_way, rows_rounded)
    grid = (pl.cdiv(n_packed, tm_eff),)

    in_specs = [pl.BlockSpec((tm_eff, p * in_dim), lambda i: (i, 0))]
    args = [xp]
    for wp, bp in zip(packed_w, packed_b):
        # Weights/biases are small and constant across the grid: full-array
        # blocks with a constant index map, DMA'd once and kept resident.
        in_specs.append(pl.BlockSpec(wp.shape, lambda i: (0, 0)))
        in_specs.append(pl.BlockSpec(bp.shape, lambda i: (0, 0)))
        args.append(wp)
        args.append(bp)

    itemsize = jnp.dtype(x.dtype).itemsize
    flops = 2 * n_packed * sum(int(w.shape[0]) * int(w.shape[1]) for w in packed_w)
    bytes_accessed = (
        n_packed * (p * in_dim + p * out_dim) * itemsize
        + sum(int(w.size) * jnp.dtype(w.dtype).itemsize for w in packed_w)
        + sum(int(b.size) * jnp.dtype(b.dtype).itemsize for b in packed_b))

    out_p = pl.pallas_call(
        functools.partial(_mlp_kernel, n_layers, chunk),
        grid=grid,
        in_specs=in_specs,
        out_specs=pl.BlockSpec((tm_eff, p * out_dim), lambda i: (i, 0)),
        out_shape=jax.ShapeDtypeStruct((n_packed, p * out_dim), x.dtype),
        compiler_params=pltpu.CompilerParams(
            dimension_semantics=("parallel",)),
        cost_estimate=pl.CostEstimate(
            flops=flops, transcendentals=0, bytes_accessed=bytes_accessed),
    )(*args)

    # Packed row r holds rows [r*P, r*P+P) concatenated, so unpacking is a free
    # contiguous reshape (no transpose, no extra HBM pass).
    return out_p.reshape(n_rows, out_dim).reshape(*lead_shape, out_dim)


def init_mlp_params(key, in_dim, out_dim, hidden_list):
    """Deterministic synthetic init (PyTorch-Linear-like uniform scaling)."""
    dims = [in_dim] + list(hidden_list) + [out_dim]
    weights, biases = [], []
    for l in range(len(dims) - 1):
        key, kw, kb = jax.random.split(key, 3)
        fan_in, fan_out = dims[l], dims[l + 1]
        bound = 1.0 / jnp.sqrt(fan_in)
        w = jax.random.uniform(kw, (fan_in, fan_out), jnp.float32, -bound, bound)
        b = jax.random.uniform(kb, (fan_out,), jnp.float32, -bound, bound)
        weights.append(w)
        biases.append(b)
    return weights, biases


def mlp_reference(x, weights, biases):
    """Pure-JAX reference matching the PyTorch forward exactly."""
    lead_shape = x.shape[:-1]
    h = x.reshape(-1, x.shape[-1])
    n_layers = len(weights)
    for l in range(n_layers):
        h = h @ weights[l] + biases[l]
        if l < n_layers - 1:
            h = jnp.maximum(h, 0.0)
    return h.reshape(*lead_shape, -1)


if __name__ == "__main__":
    key = jax.random.PRNGKey(0)

    in_dim, out_dim, hidden_list = 16, 4, [32, 32]
    key, kp = jax.random.split(key)
    weights, biases = init_mlp_params(kp, in_dim, out_dim, hidden_list)

    # Small shape consistent with the module: x = (batch, H, W, in_dim).
    key, kx = jax.random.split(key)
    x_small = jax.random.normal(kx, (2, 8, 8, in_dim), jnp.float32)
    y_small = jax.block_until_ready(mlp_forward(x_small, weights, biases))
    y_small_ref = mlp_reference(x_small, weights, biases)
    assert y_small.shape == (2, 8, 8, out_dim), y_small.shape
    assert jnp.allclose(y_small, y_small_ref, atol=1e-4, rtol=1e-4), "mismatch (small)"

    # Slightly larger check that exercises the multi-chunk fori_loop path and a
    # grid of >= 2 steps (the path v7x splits across its two TensorCores).
    key, kx2 = jax.random.split(key)
    x_big = jax.random.normal(kx2, (2, 64, 64, in_dim), jnp.float32)
    y_big = jax.block_until_ready(mlp_forward(x_big, weights, biases))
    y_big_ref = mlp_reference(x_big, weights, biases)
    assert y_big.shape == (2, 64, 64, out_dim), y_big.shape
    assert jnp.allclose(y_big, y_big_ref, atol=1e-4, rtol=1e-4), "mismatch (big)"

    print("KERNEL_OK")
</pallas_src>

<mosaic_0001>
module attributes {stable_mosaic.version = 11 : i64} {
  func.func @_mlp_kernel(%arg0: i32, %arg1: memref<256x128xf32, #tpu.memory_space<vmem>>, %arg2: memref<128x256xf32, #tpu.memory_space<vmem>>, %arg3: memref<1x256xf32, #tpu.memory_space<vmem>>, %arg4: memref<256x256xf32, #tpu.memory_space<vmem>>, %arg5: memref<1x256xf32, #tpu.memory_space<vmem>>, %arg6: memref<256x32xf32, #tpu.memory_space<vmem>>, %arg7: memref<1x32xf32, #tpu.memory_space<vmem>>, %arg8: memref<256x32xf32, #tpu.memory_space<vmem>>) attributes {dimension_semantics = [#tpu.dimension_semantics<parallel>], iteration_bounds = array<i64: 1>, scalar_prefetch = 0 : i64, scratch_operands = 0 : i64, tpu.core_type = #tpu.core_type<tc>, window_params = [{transform_indices = @transform_0, window_bounds = array<i64: 256, 128>}, {pipeline_mode = #tpu.pipeline_mode<synchronous>, transform_indices = @transform_1, window_bounds = array<i64: 128, 256>}, {pipeline_mode = #tpu.pipeline_mode<synchronous>, transform_indices = @transform_2, window_bounds = array<i64: 1, 256>}, {pipeline_mode = #tpu.pipeline_mode<synchronous>, transform_indices = @transform_3, window_bounds = array<i64: 256, 256>}, {pipeline_mode = #tpu.pipeline_mode<synchronous>, transform_indices = @transform_4, window_bounds = array<i64: 1, 256>}, {pipeline_mode = #tpu.pipeline_mode<synchronous>, transform_indices = @transform_5, window_bounds = array<i64: 256, 32>}, {pipeline_mode = #tpu.pipeline_mode<synchronous>, transform_indices = @transform_6, window_bounds = array<i64: 1, 32>}, {transform_indices = @transform_7, window_bounds = array<i64: 256, 32>}]} {
    %c0 = arith.constant 0 : index
    %c0_0 = arith.constant 0 : index
    %0 = vector.load %arg2[%c0, %c0_0] : memref<128x256xf32, #tpu.memory_space<vmem>>, vector<128x256xf32>
    %c0_1 = arith.constant 0 : index
    %c0_2 = arith.constant 0 : index
    %1 = vector.load %arg4[%c0_1, %c0_2] : memref<256x256xf32, #tpu.memory_space<vmem>>, vector<256x256xf32>
    %c0_3 = arith.constant 0 : index
    %c0_4 = arith.constant 0 : index
    %2 = vector.load %arg6[%c0_3, %c0_4] : memref<256x32xf32, #tpu.memory_space<vmem>>, vector<256x32xf32>
    %c0_5 = arith.constant 0 : index
    %c0_6 = arith.constant 0 : index
    %3 = vector.load %arg3[%c0_5, %c0_6] : memref<1x256xf32, #tpu.memory_space<vmem>>, vector<1x256xf32>
    %c0_7 = arith.constant 0 : index
    %c0_8 = arith.constant 0 : index
    %4 = vector.load %arg5[%c0_7, %c0_8] : memref<1x256xf32, #tpu.memory_space<vmem>>, vector<1x256xf32>
    %c0_9 = arith.constant 0 : index
    %c0_10 = arith.constant 0 : index
    %5 = vector.load %arg7[%c0_9, %c0_10] : memref<1x32xf32, #tpu.memory_space<vmem>>, vector<1x32xf32>
    %c0_11 = arith.constant 0 : index
    %c0_12 = arith.constant 0 : index
    %6 = vector.load %arg1[%c0_11, %c0_12] : memref<256x128xf32, #tpu.memory_space<vmem>>, vector<256x128xf32>
    %cst = arith.constant dense<0.000000e+00> : vector<256x256xf32>
    %7 = tpu.matmul %6, %0, %cst {dimension_numbers = #tpu.dot_dimension_numbers<[1], [0], [0], [1], [0, 0, 1, 1], [], []>} : vector<256x128xf32>, vector<128x256xf32>, vector<256x256xf32> -> vector<256x256xf32>
    %8 = vector.broadcast %3 : vector<1x256xf32> to vector<256x256xf32>
    %9 = arith.addf %7, %8 : vector<256x256xf32>
    %cst_13 = arith.constant 0.000000e+00 : f32
    %10 = vector.broadcast %cst_13 : f32 to vector<256x256xf32>
    %11 = arith.maximumf %9, %10 : vector<256x256xf32>
    %cst_14 = arith.constant dense<0.000000e+00> : vector<256x256xf32>
    %12 = tpu.matmul %11, %1, %cst_14 {dimension_numbers = #tpu.dot_dimension_numbers<[1], [0], [0], [1], [0, 0, 1, 1], [], []>} : vector<256x256xf32>, vector<256x256xf32>, vector<256x256xf32> -> vector<256x256xf32>
    %13 = vector.broadcast %4 : vector<1x256xf32> to vector<256x256xf32>
    %14 = arith.addf %12, %13 : vector<256x256xf32>
    %cst_15 = arith.constant 0.000000e+00 : f32
    %15 = vector.broadcast %cst_15 : f32 to vector<256x256xf32>
    %16 = arith.maximumf %14, %15 : vector<256x256xf32>
    %cst_16 = arith.constant dense<0.000000e+00> : vector<256x32xf32>
    %17 = tpu.matmul %16, %2, %cst_16 {dimension_numbers = #tpu.dot_dimension_numbers<[1], [0], [0], [1], [0, 0, 1, 1], [], []>} : vector<256x256xf32>, vector<256x32xf32>, vector<256x32xf32> -> vector<256x32xf32>
    %18 = vector.broadcast %5 : vector<1x32xf32> to vector<256x32xf32>
    %19 = arith.addf %17, %18 : vector<256x32xf32>
    %c0_17 = arith.constant 0 : index
    %c0_18 = arith.constant 0 : index
    %20 = vector.load %arg8[%c0_17, %c0_18] : memref<256x32xf32, #tpu.memory_space<vmem>>, vector<256x32xf32>
    tpu.vector_store %arg8[%c0_17, %c0_18], %19 {strides = array<i32>} : memref<256x32xf32, #tpu.memory_space<vmem>>, vector<256x32xf32>,
    return
  }
  func.func @transform_0(%arg0: i32) -> (i32, i32) {
    %c0_i32 = arith.constant 0 : i32
    %c0_i32_0 = arith.constant 0 : i32
    return %arg0, %c0_i32 : i32, i32
  }
  func.func @transform_1(%arg0: i32) -> (i32, i32) {
    %c0_i32 = arith.constant 0 : i32
    %c0_i32_0 = arith.constant 0 : i32
    %c0_i32_1 = arith.constant 0 : i32
    return %c0_i32, %c0_i32_0 : i32, i32
  }
  func.func @transform_2(%arg0: i32) -> (i32, i32) {
    %c0_i32 = arith.constant 0 : i32
    %c0_i32_0 = arith.constant 0 : i32
    %c0_i32_1 = arith.constant 0 : i32
    return %c0_i32, %c0_i32_0 : i32, i32
  }
  func.func @transform_3(%arg0: i32) -> (i32, i32) {
    %c0_i32 = arith.constant 0 : i32
    %c0_i32_0 = arith.constant 0 : i32
    %c0_i32_1 = arith.constant 0 : i32
    return %c0_i32, %c0_i32_0 : i32, i32
  }
  func.func @transform_4(%arg0: i32) -> (i32, i32) {
    %c0_i32 = arith.constant 0 : i32
    %c0_i32_0 = arith.constant 0 : i32
    %c0_i32_1 = arith.constant 0 : i32
    return %c0_i32, %c0_i32_0 : i32, i32
  }
  func.func @transform_5(%arg0: i32) -> (i32, i32) {
    %c0_i32 = arith.constant 0 : i32
    %c0_i32_0 = arith.constant 0 : i32
    %c0_i32_1 = arith.constant 0 : i32
    return %c0_i32, %c0_i32_0 : i32, i32
  }
  func.func @transform_6(%arg0: i32) -> (i32, i32) {
    %c0_i32 = arith.constant 0 : i32
    %c0_i32_0 = arith.constant 0 : i32
    %c0_i32_1 = arith.constant 0 : i32
    return %c0_i32, %c0_i32_0 : i32, i32
  }
  func.func @transform_7(%arg0: i32) -> (i32, i32) {
    %c0_i32 = arith.constant 0 : i32
    %c0_i32_0 = arith.constant 0 : i32
    return %arg0, %c0_i32 : i32, i32
  }
}

</mosaic_0001>

<llo_original>
// kernel: tpu_custom_call.1
$region0: #{tpu_custom_call.1}
  #allocation0 [shape = 'u32[]', space=smem, size = 0x4, offset = 0x4, fixed_abs, tag = 'smem constant byte address 0x4 - core index']
  #allocation1 [shape = 'u32[144,128]{1,0:T(1,128)}', space=vmem, size = 0x12000, scoped, tag = 'internal scratch']
  %s0 = inlined_call_operand.vmem [shape: f32[16,128], index: 0, kind: input, shape index: {}]
  %s1 = inlined_call_operand.vmem [shape: f32[128,256], index: 1, kind: input, shape index: {}]
  %s2 = inlined_call_operand.vmem [shape: f32[1,256], index: 2, kind: input, shape index: {}]
  %s3 = inlined_call_operand.hbm [shape: f32[256,256], index: 3, kind: input, shape index: {}]
  %s4 = inlined_call_operand.vmem [shape: f32[1,256], index: 4, kind: input, shape index: {}]
  %s5 = inlined_call_operand.vmem [shape: f32[256,32], index: 5, kind: input, shape index: {}]
  %s6 = inlined_call_operand.vmem [shape: f32[1,32], index: 6, kind: input, shape index: {}]
  %s7 = inlined_call_operand.hbm [shape: f32[16,32], index: 7, kind: output, shape index: {}]
  %s8 = sld [smem:[#allocation0]]
  $region42: #{tpu_custom_call.1} parent=0
    _
  %s10 = ssub.s32 1, %s8
  %s11 = scalar_select 0, %s10, %s8
  $region1: #{tpu_custom_call.1} parent=0
    #allocation2 [shape = 'u8[262144]{0}', space=vmem, size = 0x40000, scoped, tag = 'input window, operand 3, single buffered']
    #allocation3 [shape = 's32[1]{0}', space=sflag, size = 0x4, scoped, tag = 'scoped memory for tpu_custom_call.1']
    #allocation4 [shape = 's32[1]{0}', space=sflag, size = 0x4, scoped, tag = 'scoped memory for tpu_custom_call.1']
    #allocation5 [shape = 'u8[131072]{0}', space=vmem, size = 0x20000, scoped, tag = 'output window, operand 0, single buffered']
    %12 = vsyncpa [#allocation3], 0
    %13 = vsyncpa [#allocation4], 0
    // Predicated region
    $region2: #{tpu_custom_call.1} parent=1 // pred_check
      _
    $region3: #{tpu_custom_call.1} parent=1 // pred_check_branch
      %15 = sbr.rel (0) target = $region5
    $region4: #{tpu_custom_call.1} parent=1 // pred_region
      _
    $region5: #{tpu_custom_call.1} parent=1 // pred_fallthru
      _
    // Predicated region
    $region6: #{tpu_custom_call.1} parent=1 // pred_check
      _
    $region7: #{tpu_custom_call.1} parent=1 // pred_check_branch
      %17 = sbr.rel (0) target = $region9
    $region8: #{tpu_custom_call.1} parent=1 // pred_region
      _
    $region9: #{tpu_custom_call.1} parent=1 // pred_fallthru
      _
    // Predicated region
    $region10: #{tpu_custom_call.1} parent=1 // pred_check
      _
    $region11: #{tpu_custom_call.1} parent=1 // pred_check_branch
      %19 = sbr.rel (0) target = $region13
    $region12: #{tpu_custom_call.1} parent=1 // pred_region
      _
    $region13: #{tpu_custom_call.1} parent=1 // pred_fallthru
      _
    // Predicated region
    $region14: #{tpu_custom_call.1} parent=1 // pred_check
      _
    $region15: #{tpu_custom_call.1} parent=1 // pred_check_branch
      %21 = sbr.rel (0) target = $region17
    $region16: #{tpu_custom_call.1} parent=1 // pred_region
      %s23 = ssub.s32 8192, 8192
      %24 = vsyncadd [#allocation3], %s23
      %s25 = sshll.u32 [#allocation2], 4
      %s26 = int_to_ptr.vmem [resolvable:$true] %s25
      %31 = dma.hbm_to_vmem [thread:$0]  %s3, 8192, %s26, [#allocation3], 256, 256, 16
    $region17: #{tpu_custom_call.1} parent=1 // pred_fallthru
      _
    // Predicated region
    $region18: #{tpu_custom_call.1} parent=1 // pred_check
      _
    $region19: #{tpu_custom_call.1} parent=1 // pred_check_branch
      %33 = sbr.rel (0) target = $region21
    $region20: #{tpu_custom_call.1} parent=1 // pred_region
      _
    $region21: #{tpu_custom_call.1} parent=1 // pred_fallthru
      _
    // Predicated region
    $region22: #{tpu_custom_call.1} parent=1 // pred_check
      _
    $region23: #{tpu_custom_call.1} parent=1 // pred_check_branch
      %35 = sbr.rel (0) target = $region25
    $region24: #{tpu_custom_call.1} parent=1 // pred_region
      _
    $region25: #{tpu_custom_call.1} parent=1 // pred_fallthru
      _
    // Predicated region
    $region26: #{tpu_custom_call.1} parent=1 // pred_check
      _
    $region27: #{tpu_custom_call.1} parent=1 // pred_check_branch
      %37 = sbr.rel (0) target = $region29
    $region28: #{tpu_custom_call.1} parent=1 // pred_region
      _
    $region29: #{tpu_custom_call.1} parent=1 // pred_fallthru
      _
    // Predicated region
    $region30: #{tpu_custom_call.1} parent=1 // pred_check
      _
    $region31: #{tpu_custom_call.1} parent=1 // pred_check_branch
      %39 = sbr.rel (0) target = $region33
    $region32: #{tpu_custom_call.1} parent=1 // pred_region
      %40 = dma.done [#allocation3], 8192
    $region33: #{tpu_custom_call.1} parent=1 // pred_fallthru
      _
    %v41 = vld [vmem:[%s1] sm:$0xff]
    %v42 = vld [vmem:[%s1 + $0x8] sm:$0xff]
    %v43 = vld [vmem:[%s1 + $0x10] sm:$0xff]
    %v44 = vld [vmem:[%s1 + $0x18] sm:$0xff]
    %v45 = vld [vmem:[%s1 + $0x20] sm:$0xff]
    %v46 = vld [vmem:[%s1 + $0x28] sm:$0xff]
    %v47 = vld [vmem:[%s1 + $0x30] sm:$0xff]
    %v48 = vld [vmem:[%s1 + $0x38] sm:$0xff]
    %v49 = vld [vmem:[%s1 + $0x40] sm:$0xff]
    %v50 = vld [vmem:[%s1 + $0x48] sm:$0xff]
    %v51 = vld [vmem:[%s1 + $0x50] sm:$0xff]
    %v52 = vld [vmem:[%s1 + $0x58] sm:$0xff]
    %v53 = vld [vmem:[%s1 + $0x60] sm:$0xff]
    %v54 = vld [vmem:[%s1 + $0x68] sm:$0xff]
    %v55 = vld [vmem:[%s1 + $0x70] sm:$0xff]
    %v56 = vld [vmem:[%s1 + $0x78] sm:$0xff]
    %v57 = vld [vmem:[%s1 + $0x80] sm:$0xff]
    %v58 = vld [vmem:[%s1 + $0x88] sm:$0xff]
    %v59 = vld [vmem:[%s1 + $0x90] sm:$0xff]
    %v60 = vld [vmem:[%s1 + $0x98] sm:$0xff]
    %v61 = vld [vmem:[%s1 + $0xa0] sm:$0xff]
    %v62 = vld [vmem:[%s1 + $0xa8] sm:$0xff]
    %v63 = vld [vmem:[%s1 + $0xb0] sm:$0xff]
    %v64 = vld [vmem:[%s1 + $0xb8] sm:$0xff]
    %v65 = vld [vmem:[%s1 + $0xc0] sm:$0xff]
    %v66 = vld [vmem:[%s1 + $0xc8] sm:$0xff]
    %v67 = vld [vmem:[%s1 + $0xd0] sm:$0xff]
    %v68 = vld [vmem:[%s1 + $0xd8] sm:$0xff]
    %v69 = vld [vmem:[%s1 + $0xe0] sm:$0xff]
    %v70 = vld [vmem:[%s1 + $0xe8] sm:$0xff]
    %v71 = vld [vmem:[%s1 + $0xf0] sm:$0xff]
    %v72 = vld [vmem:[%s1 + $0xf8] sm:$0xff]
    %v73 = vld [vmem:[#allocation2] sm:$0xff]
    %v74 = vld [vmem:[#allocation2 + $0x8] sm:$0xff]
    %v75 = vld [vmem:[#allocation2 + $0x10] sm:$0xff]
    %v76 = vld [vmem:[#allocation2 + $0x18] sm:$0xff]
    %v77 = vld [vmem:[#allocation2 + $0x20] sm:$0xff]
    %v78 = vld [vmem:[#allocation2 + $0x28] sm:$0xff]
    %v79 = vld [vmem:[#allocation2 + $0x30] sm:$0xff]
    %v80 = vld [vmem:[#allocation2 + $0x38] sm:$0xff]
    %v81 = vld [vmem:[#allocation2 + $0x40] sm:$0xff]
    %v82 = vld [vmem:[#allocation2 + $0x48] sm:$0xff]
    %v83 = vld [vmem:[#allocation2 + $0x50] sm:$0xff]
    %v84 = vld [vmem:[#allocation2 + $0x58] sm:$0xff]
    %v85 = vld [vmem:[#allocation2 + $0x60] sm:$0xff]
    %v86 = vld [vmem:[#allocation2 + $0x68] sm:$0xff]
    %v87 = vld [vmem:[#allocation2 + $0x70] sm:$0xff]
    %v88 = vld [vmem:[#allocation2 + $0x78] sm:$0xff]
    %v89 = vld [vmem:[#allocation2 + $0x80] sm:$0xff]
    %v90 = vld [vmem:[#allocation2 + $0x88] sm:$0xff]
    %v91 = vld [vmem:[#allocation2 + $0x90] sm:$0xff]
    %v92 = vld [vmem:[#allocation2 + $0x98] sm:$0xff]
    %v93 = vld [vmem:[#allocation2 + $0xa0] sm:$0xff]
    %v94 = vld [vmem:[#allocation2 + $0xa8] sm:$0xff]
    %v95 = vld [vmem:[#allocation2 + $0xb0] sm:$0xff]
    %v96 = vld [vmem:[#allocation2 + $0xb8] sm:$0xff]
    %v97 = vld [vmem:[#allocation2 + $0xc0] sm:$0xff]
    %v98 = vld [vmem:[#allocation2 + $0xc8] sm:$0xff]
    %v99 = vld [vmem:[#allocation2 + $0xd0] sm:$0xff]
    %v100 = vld [vmem:[#allocation2 + $0xd8] sm:$0xff]
    %v101 = vld [vmem:[#allocation2 + $0xe0] sm:$0xff]
    %v102 = vld [vmem:[#allocation2 + $0xe8] sm:$0xff]
    %v103 = vld [vmem:[#allocation2 + $0xf0] sm:$0xff]
    %v104 = vld [vmem:[#allocation2 + $0xf8] sm:$0xff]
    %v105 = vld [vmem:[#allocation2 + $0x100] sm:$0xff]
    %v106 = vld [vmem:[#allocation2 + $0x108] sm:$0xff]
    %v107 = vld [vmem:[#allocation2 + $0x110] sm:$0xff]
    %v108 = vld [vmem:[#allocation2 + $0x118] sm:$0xff]
    %v109 = vld [vmem:[#allocation2 + $0x120] sm:$0xff]
    %v110 = vld [vmem:[#allocation2 + $0x128] sm:$0xff]
    %v111 = vld [vmem:[#allocation2 + $0x130] sm:$0xff]
    %v112 = vld [vmem:[#allocation2 + $0x138] sm:$0xff]
    %v113 = vld [vmem:[#allocation2 + $0x140] sm:$0xff]
    %v114 = vld [vmem:[#allocation2 + $0x148] sm:$0xff]
    %v115 = vld [vmem:[#allocation2 + $0x150] sm:$0xff]
    %v116 = vld [vmem:[#allocation2 + $0x158] sm:$0xff]
    %v117 = vld [vmem:[#allocation2 + $0x160] sm:$0xff]
    %v118 = vld [vmem:[#allocation2 + $0x168] sm:$0xff]
    %v119 = vld [vmem:[#allocation2 + $0x170] sm:$0xff]
    %v120 = vld [vmem:[#allocation2 + $0x178] sm:$0xff]
    %v121 = vld [vmem:[#allocation2 + $0x180] sm:$0xff]
    %v122 = vld [vmem:[#allocation2 + $0x188] sm:$0xff]
    %v123 = vld [vmem:[#allocation2 + $0x190] sm:$0xff]
    %v124 = vld [vmem:[#allocation2 + $0x198] sm:$0xff]
    %v125 = vld [vmem:[#allocation2 + $0x1a0] sm:$0xff]
    %v126 = vld [vmem:[#allocation2 + $0x1a8] sm:$0xff]
    %v127 = vld [vmem:[#allocation2 + $0x1b0] sm:$0xff]
    %v128 = vld [vmem:[#allocation2 + $0x1b8] sm:$0xff]
    %v129 = vld [vmem:[#allocation2 + $0x1c0] sm:$0xff]
    %v130 = vld [vmem:[#allocation2 + $0x1c8] sm:$0xff]
    %v131 = vld [vmem:[#allocation2 + $0x1d0] sm:$0xff]
    %v132 = vld [vmem:[#allocation2 + $0x1d8] sm:$0xff]
    %v133 = vld [vmem:[#allocation2 + $0x1e0] sm:$0xff]
    %v134 = vld [vmem:[#allocation2 + $0x1e8] sm:$0xff]
    %v135 = vld [vmem:[#allocation2 + $0x1f0] sm:$0xff]
    %v136 = vld [vmem:[#allocation2 + $0x1f8] sm:$0xff]
    %v137 = vld [vmem:[%s5] sm:$0xff]
    %v138 = vld [vmem:[%s5 + $0x8] sm:$0xff]
    %v139 = vld [vmem:[%s5 + $0x10] sm:$0xff]
    %v140 = vld [vmem:[%s5 + $0x18] sm:$0xff]
    %v141 = vld [vmem:[%s5 + $0x20] sm:$0xff]
    %v142 = vld [vmem:[%s5 + $0x28] sm:$0xff]
    %v143 = vld [vmem:[%s5 + $0x30] sm:$0xff]
    %v144 = vld [vmem:[%s5 + $0x38] sm:$0xff]
    %v145 = vld [vmem:[%s5 + $0x40] sm:$0xff]
    %v146 = vld [vmem:[%s5 + $0x48] sm:$0xff]
    %v147 = vld [vmem:[%s5 + $0x50] sm:$0xff]
    %v148 = vld [vmem:[%s5 + $0x58] sm:$0xff]
    %v149 = vld [vmem:[%s5 + $0x60] sm:$0xff]
    %v150 = vld [vmem:[%s5 + $0x68] sm:$0xff]
    %v151 = vld [vmem:[%s5 + $0x70] sm:$0xff]
    %v152 = vld [vmem:[%s5 + $0x78] sm:$0xff]
    %v153 = vld [vmem:[%s5 + $0x80] sm:$0xff]
    %v154 = vld [vmem:[%s5 + $0x88] sm:$0xff]
    %v155 = vld [vmem:[%s5 + $0x90] sm:$0xff]
    %v156 = vld [vmem:[%s5 + $0x98] sm:$0xff]
    %v157 = vld [vmem:[%s5 + $0xa0] sm:$0xff]
    %v158 = vld [vmem:[%s5 + $0xa8] sm:$0xff]
    %v159 = vld [vmem:[%s5 + $0xb0] sm:$0xff]
    %v160 = vld [vmem:[%s5 + $0xb8] sm:$0xff]
    %v161 = vld [vmem:[%s5 + $0xc0] sm:$0xff]
    %v162 = vld [vmem:[%s5 + $0xc8] sm:$0xff]
    %v163 = vld [vmem:[%s5 + $0xd0] sm:$0xff]
    %v164 = vld [vmem:[%s5 + $0xd8] sm:$0xff]
    %v165 = vld [vmem:[%s5 + $0xe0] sm:$0xff]
    %v166 = vld [vmem:[%s5 + $0xe8] sm:$0xff]
    %v167 = vld [vmem:[%s5 + $0xf0] sm:$0xff]
    %v168 = vld [vmem:[%s5 + $0xf8] sm:$0xff]
    %v169 = vld [vmem:[%s2] sm:$0x3]
    %v170 = vld [vmem:[%s4] sm:$0x3]
    %v171 = vld [vmem:[%s6] sm:$0x1]
    %v172 = vld [vmem:[%s0] sm:$0xff]
    %v173 = vld [vmem:[%s0 + $0x8] sm:$0xff]
    %v174 = vld [vmem:[%s0 + $0x10] sm:$0xff]
    %v175 = vld [vmem:[%s0 + $0x18] sm:$0xff]
    %v176 = vld [vmem:[%s0 + $0x20] sm:$0xff]
    %v177 = vld [vmem:[%s0 + $0x28] sm:$0xff]
    %v178 = vld [vmem:[%s0 + $0x30] sm:$0xff]
    %v179 = vld [vmem:[%s0 + $0x38] sm:$0xff]
    %v180 = vld [vmem:[%s0 + $0x40] sm:$0xff]
    %v181 = vld [vmem:[%s0 + $0x48] sm:$0xff]
    %v182 = vld [vmem:[%s0 + $0x50] sm:$0xff]
    %v183 = vld [vmem:[%s0 + $0x58] sm:$0xff]
    %v184 = vld [vmem:[%s0 + $0x60] sm:$0xff]
    %v185 = vld [vmem:[%s0 + $0x68] sm:$0xff]
    %v186 = vld [vmem:[%s0 + $0x70] sm:$0xff]
    %v187 = vld [vmem:[%s0 + $0x78] sm:$0xff]
    %v188 = vld [vmem:[%s0 + $0x80] sm:$0xff]
    %v189 = vld [vmem:[%s0 + $0x88] sm:$0xff]
    %v190 = vld [vmem:[%s0 + $0x90] sm:$0xff]
    %v191 = vld [vmem:[%s0 + $0x98] sm:$0xff]
    %v192 = vld [vmem:[%s0 + $0xa0] sm:$0xff]
    %v193 = vld [vmem:[%s0 + $0xa8] sm:$0xff]
    %v194 = vld [vmem:[%s0 + $0xb0] sm:$0xff]
    %v195 = vld [vmem:[%s0 + $0xb8] sm:$0xff]
    %v196 = vld [vmem:[%s0 + $0xc0] sm:$0xff]
    %v197 = vld [vmem:[%s0 + $0xc8] sm:$0xff]
    %v198 = vld [vmem:[%s0 + $0xd0] sm:$0xff]
    %v199 = vld [vmem:[%s0 + $0xd8] sm:$0xff]
    %v200 = vld [vmem:[%s0 + $0xe0] sm:$0xff]
    %v201 = vld [vmem:[%s0 + $0xe8] sm:$0xff]
    %v202 = vld [vmem:[%s0 + $0xf0] sm:$0xff]
    %v203 = vld [vmem:[%s0 + $0xf8] sm:$0xff]
    %v205 = vlaneseq
    %v206 = vshrl.u32 %v205, 7
    %v207 = vsub.s32 0, %v206
    %v208 = vrot.slane %v169, %v207
    %v209 = vlaneseq
    %v210 = vshrl.u32 %v209, 7
    %v211 = vsub.s32 1, %v210
    %v212 = vrot.slane %v169, %v211
    %215 = vmatprep.subr.mxu0 %v42
    %216 = vmatpush1.msra.mxu0 %v41
    %217 = vmatprep.subr.mxu0 %v44
    %218 = vmatpush1.msra.mxu0 %v43
    %219 = vmatprep.subr.mxu0 %v46
    %220 = vmatpush1.msra.mxu0 %v45
    %221 = vmatprep.subr.mxu0 %v48
    %222 = vmatpush1.msra.mxu0 %v47
    %223 = vmatprep.subr.mxu0 %v50
    %224 = vmatpush1.msra.mxu0 %v49
    %225 = vmatprep.subr.mxu0 %v52
    %226 = vmatpush1.msra.mxu0 %v51
    %227 = vmatprep.subr.mxu0 %v54
    %228 = vmatpush1.msra.mxu0 %v53
    %229 = vmatprep.subr.mxu0 %v56
    %230 = vmatpush1.msra.mxu0 %v55
    %231 = vmatprep.subr.mxu0 %v58
    %232 = vmatpush1.msra.mxu0 %v57
    %233 = vmatprep.subr.mxu0 %v60
    %234 = vmatpush1.msra.mxu0 %v59
    %235 = vmatprep.subr.mxu0 %v62
    %236 = vmatpush1.msra.mxu0 %v61
    %237 = vmatprep.subr.mxu0 %v64
    %238 = vmatpush1.msra.mxu0 %v63
    %239 = vmatprep.subr.mxu0 %v66
    %240 = vmatpush1.msra.mxu0 %v65
    %241 = vmatprep.subr.mxu0 %v68
    %242 = vmatpush1.msra.mxu0 %v67
    %243 = vmatprep.subr.mxu0 %v70
    %244 = vmatpush1.msra.mxu0 %v69
    %245 = vmatprep.subr.mxu0 %v72
    %246 = vmatpush1.msra.mxu0 %v71
    %247 = vmatprep.subr.mxu0 0.0
    %248 = vmatpush1.msra.mxu0 0.0
    %249 = vmatprep.subr.mxu0 0.0
    %250 = vmatpush1.msra.mxu0 0.0
    %251 = vmatprep.subr.mxu0 0.0
    %252 = vmatpush1.msra.mxu0 0.0
    %253 = vmatprep.subr.mxu0 0.0
    %254 = vmatpush1.msra.mxu0 0.0
    %255 = vmatprep.subr.mxu0 0.0
    %256 = vmatpush1.msra.mxu0 0.0
    %257 = vmatprep.subr.mxu0 0.0
    %258 = vmatpush1.msra.mxu0 0.0
    %259 = vmatprep.subr.mxu0 0.0
    %260 = vmatpush1.msra.mxu0 0.0
    %261 = vmatprep.subr.mxu0 0.0
    %262 = vmatpush1.msra.mxu0 0.0
    %263 = vmatprep.subr.mxu0 0.0
    %264 = vmatpush1.msra.mxu0 0.0
    %265 = vmatprep.subr.mxu0 0.0
    %266 = vmatpush1.msra.mxu0 0.0
    %267 = vmatprep.subr.mxu0 0.0
    %268 = vmatpush1.msra.mxu0 0.0
    %269 = vmatprep.subr.mxu0 0.0
    %270 = vmatpush1.msra.mxu0 0.0
    %271 = vmatprep.subr.mxu0 0.0
    %272 = vmatpush1.msra.mxu0 0.0
    %273 = vmatprep.subr.mxu0 0.0
    %274 = vmatpush1.msra.mxu0 0.0
    %275 = vmatprep.subr.mxu0 0.0
    %276 = vmatpush1.msra.mxu0 0.0
    %277 = vmatprep.subr.mxu0 0.0
    %278 = vmatpush1.msra.mxu0 0.0
    %279 = vmatprep.mubr.f32.mxu0 0.0
    %280 = vmatmul.mubr.f32.gmra.mrb[0].mxu0 %v172
    %v281 = vpop.f32.mrb[0].mxu0
    %v282 = vadd.f32 %v208, %v281
    %v283 = vpop.f32.mrb[0].mxu0
    %v284 = vadd.f32 %v212, %v283
    %285 = vmatprep.mubr.f32.mxu0 0.0
    %286 = vmatmul.mubr.f32.gmra.mrb[0].mxu0 %v173
    %v287 = vpop.f32.mrb[0].mxu0
    %v288 = vadd.f32 %v208, %v287
    %v289 = vpop.f32.mrb[0].mxu0
    %v290 = vadd.f32 %v212, %v289
    %291 = vmatprep.mubr.f32.mxu0 0.0
    %292 = vmatmul.mubr.f32.gmra.mrb[0].mxu0 %v174
    %v293 = vpop.f32.mrb[0].mxu0
    %v294 = vadd.f32 %v208, %v293
    %v295 = vpop.f32.mrb[0].mxu0
    %v296 = vadd.f32 %v212, %v295
    %297 = vmatprep.mubr.f32.mxu0 0.0
    %298 = vmatmul.mubr.f32.gmra.mrb[0].mxu0 %v175
    %v299 = vpop.f32.mrb[0].mxu0
    %v300 = vadd.f32 %v208, %v299
    %v301 = vpop.f32.mrb[0].mxu0
    %v302 = vadd.f32 %v212, %v301
    %303 = vmatprep.mubr.f32.mxu0 0.0
    %304 = vmatmul.mubr.f32.gmra.mrb[0].mxu0 %v176
    %v305 = vpop.f32.mrb[0].mxu0
    %v306 = vadd.f32 %v208, %v305
    %v307 = vpop.f32.mrb[0].mxu0
    %v308 = vadd.f32 %v212, %v307
    %309 = vmatprep.mubr.f32.mxu0 0.0
    %310 = vmatmul.mubr.f32.gmra.mrb[0].mxu0 %v177
    %v311 = vpop.f32.mrb[0].mxu0
    %v312 = vadd.f32 %v208, %v311
    %v313 = vpop.f32.mrb[0].mxu0
    %v314 = vadd.f32 %v212, %v313
    %315 = vmatprep.mubr.f32.mxu0 0.0
    %316 = vmatmul.mubr.f32.gmra.mrb[0].mxu0 %v178
    %v317 = vpop.f32.mrb[0].mxu0
    %v318 = vadd.f32 %v208, %v317
    %v319 = vpop.f32.mrb[0].mxu0
    %v320 = vadd.f32 %v212, %v319
    %321 = vmatprep.mubr.f32.mxu0 0.0
    %322 = vmatmul.mubr.f32.gmra.mrb[0].mxu0 %v179
    %v323 = vpop.f32.mrb[0].mxu0
    %v324 = vadd.f32 %v208, %v323
    %v325 = vpop.f32.mrb[0].mxu0
    %v326 = vadd.f32 %v212, %v325
    %327 = vmatprep.mubr.f32.mxu0 0.0
    %328 = vmatmul.mubr.f32.gmra.mrb[0].mxu0 %v180
    %v329 = vpop.f32.mrb[0].mxu0
    %v330 = vadd.f32 %v208, %v329
    %v331 = vpop.f32.mrb[0].mxu0
    %v332 = vadd.f32 %v212, %v331
    %333 = vmatprep.mubr.f32.mxu0 0.0
    %334 = vmatmul.mubr.f32.gmra.mrb[0].mxu0 %v181
    %v335 = vpop.f32.mrb[0].mxu0
    %v336 = vadd.f32 %v208, %v335
    %v337 = vpop.f32.mrb[0].mxu0
    %v338 = vadd.f32 %v212, %v337
    %339 = vmatprep.mubr.f32.mxu0 0.0
    %340 = vmatmul.mubr.f32.gmra.mrb[0].mxu0 %v182
    %v341 = vpop.f32.mrb[0].mxu0
    %v342 = vadd.f32 %v208, %v341
    %v343 = vpop.f32.mrb[0].mxu0
    %v344 = vadd.f32 %v212, %v343
    %345 = vmatprep.mubr.f32.mxu0 0.0
    %346 = vmatmul.mubr.f32.gmra.mrb[0].mxu0 %v183
    %v347 = vpop.f32.mrb[0].mxu0
    %v348 = vadd.f32 %v208, %v347
    %v349 = vpop.f32.mrb[0].mxu0
    %v350 = vadd.f32 %v212, %v349
    %351 = vmatprep.mubr.f32.mxu0 0.0
    %352 = vmatmul.mubr.f32.gmra.mrb[0].mxu0 %v184
    %v353 = vpop.f32.mrb[0].mxu0
    %v354 = vadd.f32 %v208, %v353
    %v355 = vpop.f32.mrb[0].mxu0
    %v356 = vadd.f32 %v212, %v355
    %357 = vmatprep.mubr.f32.mxu0 0.0
    %358 = vmatmul.mubr.f32.gmra.mrb[0].mxu0 %v185
    %v359 = vpop.f32.mrb[0].mxu0
    %v360 = vadd.f32 %v208, %v359
    %v361 = vpop.f32.mrb[0].mxu0
    %v362 = vadd.f32 %v212, %v361
    %363 = vmatprep.mubr.f32.mxu0 0.0
    %364 = vmatmul.mubr.f32.gmra.mrb[0].mxu0 %v186
    %v365 = vpop.f32.mrb[0].mxu0
    %v366 = vadd.f32 %v208, %v365
    %v367 = vpop.f32.mrb[0].mxu0
    %v368 = vadd.f32 %v212, %v367
    %369 = vmatprep.mubr.f32.mxu0 0.0
    %370 = vmatmul.mubr.f32.gmra.mrb[0].mxu0 %v187
    %v371 = vpop.f32.mrb[0].mxu0
    %v372 = vadd.f32 %v208, %v371
    %v373 = vpop.f32.mrb[0].mxu0
    %v374 = vadd.f32 %v212, %v373
    %375 = vmatprep.mubr.f32.mxu0 0.0
    %376 = vmatmul.mubr.f32.gmra.mrb[0].mxu0 %v188
    %v377 = vpop.f32.mrb[0].mxu0
    %v378 = vadd.f32 %v208, %v377
    %v379 = vpop.f32.mrb[0].mxu0
    %v380 = vadd.f32 %v212, %v379
    %381 = vmatprep.mubr.f32.mxu0 0.0
    %382 = vmatmul.mubr.f32.gmra.mrb[0].mxu0 %v189
    %v383 = vpop.f32.mrb[0].mxu0
    %v384 = vadd.f32 %v208, %v383
    %v385 = vpop.f32.mrb[0].mxu0
    %v386 = vadd.f32 %v212, %v385
    %387 = vmatprep.mubr.f32.mxu0 0.0
    %388 = vmatmul.mubr.f32.gmra.mrb[0].mxu0 %v190
    %v389 = vpop.f32.mrb[0].mxu0
    %v390 = vadd.f32 %v208, %v389
    %v391 = vpop.f32.mrb[0].mxu0
    %v392 = vadd.f32 %v212, %v391
    %393 = vmatprep.mubr.f32.mxu0 0.0
    %394 = vmatmul.mubr.f32.gmra.mrb[0].mxu0 %v191
    %v395 = vpop.f32.mrb[0].mxu0
    %v396 = vadd.f32 %v208, %v395
    %v397 = vpop.f32.mrb[0].mxu0
    %v398 = vadd.f32 %v212, %v397
    %399 = vmatprep.mubr.f32.mxu0 0.0
    %400 = vmatmul.mubr.f32.gmra.mrb[0].mxu0 %v192
    %v401 = vpop.f32.mrb[0].mxu0
    %v402 = vadd.f32 %v208, %v401
    %v403 = vpop.f32.mrb[0].mxu0
    %v404 = vadd.f32 %v212, %v403
    %405 = vmatprep.mubr.f32.mxu0 0.0
    %406 = vmatmul.mubr.f32.gmra.mrb[0].mxu0 %v193
    %v407 = vpop.f32.mrb[0].mxu0
    %v408 = vadd.f32 %v208, %v407
    %v409 = vpop.f32.mrb[0].mxu0
    %v410 = vadd.f32 %v212, %v409
    %411 = vmatprep.mubr.f32.mxu0 0.0
    %412 = vmatmul.mubr.f32.gmra.mrb[0].mxu0 %v194
    %v413 = vpop.f32.mrb[0].mxu0
    %v414 = vadd.f32 %v208, %v413
    %v415 = vpop.f32.mrb[0].mxu0
    %v416 = vadd.f32 %v212, %v415
    %417 = vmatprep.mubr.f32.mxu0 0.0
    %418 = vmatmul.mubr.f32.gmra.mrb[0].mxu0 %v195
    %v419 = vpop.f32.mrb[0].mxu0
    %v420 = vadd.f32 %v208, %v419
    %v421 = vpop.f32.mrb[0].mxu0
    %v422 = vadd.f32 %v212, %v421
    %423 = vmatprep.mubr.f32.mxu0 0.0
    %424 = vmatmul.mubr.f32.gmra.mrb[0].mxu0 %v196
    %v425 = vpop.f32.mrb[0].mxu0
    %v426 = vadd.f32 %v208, %v425
    %v427 = vpop.f32.mrb[0].mxu0
    %v428 = vadd.f32 %v212, %v427
    %429 = vmatprep.mubr.f32.mxu0 0.0
    %430 = vmatmul.mubr.f32.gmra.mrb[0].mxu0 %v197
    %v431 = vpop.f32.mrb[0].mxu0
    %v432 = vadd.f32 %v208, %v431
    %v433 = vpop.f32.mrb[0].mxu0
    %v434 = vadd.f32 %v212, %v433
    %435 = vmatprep.mubr.f32.mxu0 0.0
    %436 = vmatmul.mubr.f32.gmra.mrb[0].mxu0 %v198
    %v437 = vpop.f32.mrb[0].mxu0
    %v438 = vadd.f32 %v208, %v437
    %v439 = vpop.f32.mrb[0].mxu0
    %v440 = vadd.f32 %v212, %v439
    %441 = vmatprep.mubr.f32.mxu0 0.0
    %442 = vmatmul.mubr.f32.gmra.mrb[0].mxu0 %v199
    %v443 = vpop.f32.mrb[0].mxu0
    %v444 = vadd.f32 %v208, %v443
    %v445 = vpop.f32.mrb[0].mxu0
    %v446 = vadd.f32 %v212, %v445
    %447 = vmatprep.mubr.f32.mxu0 0.0
    %448 = vmatmul.mubr.f32.gmra.mrb[0].mxu0 %v200
    %v449 = vpop.f32.mrb[0].mxu0
    %v450 = vadd.f32 %v208, %v449
    %v451 = vpop.f32.mrb[0].mxu0
    %v452 = vadd.f32 %v212, %v451
    %453 = vmatprep.mubr.f32.mxu0 0.0
    %454 = vmatmul.mubr.f32.gmra.mrb[0].mxu0 %v201
    %v455 = vpop.f32.mrb[0].mxu0
    %v456 = vadd.f32 %v208, %v455
    %v457 = vpop.f32.mrb[0].mxu0
    %v458 = vadd.f32 %v212, %v457
    %459 = vmatprep.mubr.f32.mxu0 0.0
    %460 = vmatmul.mubr.f32.gmra.mrb[0].mxu0 %v202
    %v461 = vpop.f32.mrb[0].mxu0
    %v462 = vadd.f32 %v208, %v461
    %v463 = vpop.f32.mrb[0].mxu0
    %v464 = vadd.f32 %v212, %v463
    %465 = vmatprep.mubr.f32.mxu0 0.0
    %466 = vmatmul.mubr.f32.gmra.mrb[0].mxu0 %v203
    %v467 = vpop.f32.mrb[0].mxu0
    %v468 = vadd.f32 %v208, %v467
    %v469 = vpop.f32.mrb[0].mxu0
    %v470 = vadd.f32 %v212, %v469
    %471 = vdwg.mxu0
    %v472 = vmax.f32 %v282, 0.0
    %v473 = vmax.f32 %v284, 0.0
    %v474 = vmax.f32 %v288, 0.0
    %v475 = vmax.f32 %v290, 0.0
    %v476 = vmax.f32 %v294, 0.0
    %v477 = vmax.f32 %v296, 0.0
    %v478 = vmax.f32 %v300, 0.0
    %v479 = vmax.f32 %v302, 0.0
    %v480 = vmax.f32 %v306, 0.0
    %v481 = vmax.f32 %v308, 0.0
    %v482 = vmax.f32 %v312, 0.0
    %v483 = vmax.f32 %v314, 0.0
    %v484 = vmax.f32 %v318, 0.0
    %v485 = vmax.f32 %v320, 0.0
    %v486 = vmax.f32 %v324, 0.0
    %v487 = vmax.f32 %v326, 0.0
    %v488 = vmax.f32 %v330, 0.0
    %v489 = vmax.f32 %v332, 0.0
    %v490 = vmax.f32 %v336, 0.0
    %v491 = vmax.f32 %v338, 0.0
    %v492 = vmax.f32 %v342, 0.0
    %v493 = vmax.f32 %v344, 0.0
    %v494 = vmax.f32 %v348, 0.0
    %v495 = vmax.f32 %v350, 0.0
    %v496 = vmax.f32 %v354, 0.0
    %v497 = vmax.f32 %v356, 0.0
    %v498 = vmax.f32 %v360, 0.0
    %v499 = vmax.f32 %v362, 0.0
    %v500 = vmax.f32 %v366, 0.0
    %v501 = vmax.f32 %v368, 0.0
    %v502 = vmax.f32 %v372, 0.0
    %v503 = vmax.f32 %v374, 0.0
    %v504 = vmax.f32 %v378, 0.0
    %v505 = vmax.f32 %v380, 0.0
    %v506 = vmax.f32 %v384, 0.0
    %v507 = vmax.f32 %v386, 0.0
    %v508 = vmax.f32 %v390, 0.0
    %v509 = vmax.f32 %v392, 0.0
    %v510 = vmax.f32 %v396, 0.0
    %v511 = vmax.f32 %v398, 0.0
    %v512 = vmax.f32 %v402, 0.0
    %v513 = vmax.f32 %v404, 0.0
    %v514 = vmax.f32 %v408, 0.0
    %v515 = vmax.f32 %v410, 0.0
    %v516 = vmax.f32 %v414, 0.0
    %v517 = vmax.f32 %v416, 0.0
    %v518 = vmax.f32 %v420, 0.0
    %v519 = vmax.f32 %v422, 0.0
    %v520 = vmax.f32 %v426, 0.0
    %v521 = vmax.f32 %v428, 0.0
    %v522 = vmax.f32 %v432, 0.0
    %v523 = vmax.f32 %v434, 0.0
    %v524 = vmax.f32 %v438, 0.0
    %v525 = vmax.f32 %v440, 0.0
    %v526 = vmax.f32 %v444, 0.0
    %v527 = vmax.f32 %v446, 0.0
    %v528 = vmax.f32 %v450, 0.0
    %v529 = vmax.f32 %v452, 0.0
    %v530 = vmax.f32 %v456, 0.0
    %v531 = vmax.f32 %v458, 0.0
    %v532 = vmax.f32 %v462, 0.0
    %v533 = vmax.f32 %v464, 0.0
    %v534 = vmax.f32 %v468, 0.0
    %v535 = vmax.f32 %v470, 0.0
    %v537 = vlaneseq
    %v538 = vshrl.u32 %v537, 7
    %v539 = vsub.s32 0, %v538
    %v540 = vrot.slane %v170, %v539
    %v541 = vlaneseq
    %v542 = vshrl.u32 %v541, 7
    %v543 = vsub.s32 1, %v542
    %v544 = vrot.slane %v170, %v543
    %547 = vmatprep.subr.mxu0 %v74
    %548 = vmatpush1.msra.mxu0 %v73
    %549 = vmatprep.subr.mxu0 %v76
    %550 = vmatpush1.msra.mxu0 %v75
    %551 = vmatprep.subr.mxu0 %v78
    %552 = vmatpush1.msra.mxu0 %v77
    %553 = vmatprep.subr.mxu0 %v80
    %554 = vmatpush1.msra.mxu0 %v79
    %555 = vmatprep.subr.mxu0 %v82
    %556 = vmatpush1.msra.mxu0 %v81
    %557 = vmatprep.subr.mxu0 %v84
    %558 = vmatpush1.msra.mxu0 %v83
    %559 = vmatprep.subr.mxu0 %v86
    %560 = vmatpush1.msra.mxu0 %v85
    %561 = vmatprep.subr.mxu0 %v88
    %562 = vmatpush1.msra.mxu0 %v87
    %563 = vmatprep.subr.mxu0 %v90
    %564 = vmatpush1.msra.mxu0 %v89
    %565 = vmatprep.subr.mxu0 %v92
    %566 = vmatpush1.msra.mxu0 %v91
    %567 = vmatprep.subr.mxu0 %v94
    %568 = vmatpush1.msra.mxu0 %v93
    %569 = vmatprep.subr.mxu0 %v96
    %570 = vmatpush1.msra.mxu0 %v95
    %571 = vmatprep.subr.mxu0 %v98
    %572 = vmatpush1.msra.mxu0 %v97
    %573 = vmatprep.subr.mxu0 %v100
    %574 = vmatpush1.msra.mxu0 %v99
    %575 = vmatprep.subr.mxu0 %v102
    %576 = vmatpush1.msra.mxu0 %v101
    %577 = vmatprep.subr.mxu0 %v104
    %578 = vmatpush1.msra.mxu0 %v103
    %579 = vmatprep.subr.mxu0 %v106
    %580 = vmatpush1.msra.mxu0 %v105
    %581 = vmatprep.subr.mxu0 %v108
    %582 = vmatpush1.msra.mxu0 %v107
    %583 = vmatprep.subr.mxu0 %v110
    %584 = vmatpush1.msra.mxu0 %v109
    %585 = vmatprep.subr.mxu0 %v112
    %586 = vmatpush1.msra.mxu0 %v111
    %587 = vmatprep.subr.mxu0 %v114
    %588 = vmatpush1.msra.mxu0 %v113
    %589 = vmatprep.subr.mxu0 %v116
    %590 = vmatpush1.msra.mxu0 %v115
    %591 = vmatprep.subr.mxu0 %v118
    %592 = vmatpush1.msra.mxu0 %v117
    %593 = vmatprep.subr.mxu0 %v120
    %594 = vmatpush1.msra.mxu0 %v119
    %595 = vmatprep.subr.mxu0 %v122
    %596 = vmatpush1.msra.mxu0 %v121
    %597 = vmatprep.subr.mxu0 %v124
    %598 = vmatpush1.msra.mxu0 %v123
    %599 = vmatprep.subr.mxu0 %v126
    %600 = vmatpush1.msra.mxu0 %v125
    %601 = vmatprep.subr.mxu0 %v128
    %602 = vmatpush1.msra.mxu0 %v127
    %603 = vmatprep.subr.mxu0 %v130
    %604 = vmatpush1.msra.mxu0 %v129
    %605 = vmatprep.subr.mxu0 %v132
    %606 = vmatpush1.msra.mxu0 %v131
    %607 = vmatprep.subr.mxu0 %v134
    %608 = vmatpush1.msra.mxu0 %v133
    %609 = vmatprep.subr.mxu0 %v136
    %610 = vmatpush1.msra.mxu0 %v135
    %611 = vmatprep.mubr.f32.mxu0 %v473
    %612 = vmatmul.mubr.f32.gmra.mrb[0].mxu0 %v472
    %v613 = vpop.f32.mrb[0].mxu0
    %v614 = vadd.f32 %v540, %v613
    %v615 = vpop.f32.mrb[0].mxu0
    %v616 = vadd.f32 %v544, %v615
    %617 = vmatprep.mubr.f32.mxu0 %v475
    %618 = vmatmul.mubr.f32.gmra.mrb[0].mxu0 %v474
    %v619 = vpop.f32.mrb[0].mxu0
    %v620 = vadd.f32 %v540, %v619
    %v621 = vpop.f32.mrb[0].mxu0
    %v622 = vadd.f32 %v544, %v621
    %623 = vmatprep.mubr.f32.mxu0 %v477
    %624 = vmatmul.mubr.f32.gmra.mrb[0].mxu0 %v476
    %v625 = vpop.f32.mrb[0].mxu0
    %v626 = vadd.f32 %v540, %v625
    %v627 = vpop.f32.mrb[0].mxu0
    %v628 = vadd.f32 %v544, %v627
    %629 = vmatprep.mubr.f32.mxu0 %v479
    %630 = vmatmul.mubr.f32.gmra.mrb[0].mxu0 %v478
    %v631 = vpop.f32.mrb[0].mxu0
    %v632 = vadd.f32 %v540, %v631
    %v633 = vpop.f32.mrb[0].mxu0
    %v634 = vadd.f32 %v544, %v633
    %635 = vmatprep.mubr.f32.mxu0 %v481
    %636 = vmatmul.mubr.f32.gmra.mrb[0].mxu0 %v480
    %v637 = vpop.f32.mrb[0].mxu0
    %v638 = vadd.f32 %v540, %v637
    %v639 = vpop.f32.mrb[0].mxu0
    %v640 = vadd.f32 %v544, %v639
    %641 = vmatprep.mubr.f32.mxu0 %v483
    %642 = vmatmul.mubr.f32.gmra.mrb[0].mxu0 %v482
    %v643 = vpop.f32.mrb[0].mxu0
    %v644 = vadd.f32 %v540, %v643
    %v645 = vpop.f32.mrb[0].mxu0
    %v646 = vadd.f32 %v544, %v645
    %647 = vmatprep.mubr.f32.mxu0 %v485
    %648 = vmatmul.mubr.f32.gmra.mrb[0].mxu0 %v484
    %v649 = vpop.f32.mrb[0].mxu0
    %v650 = vadd.f32 %v540, %v649
    %v651 = vpop.f32.mrb[0].mxu0
    %v652 = vadd.f32 %v544, %v651
    %653 = vmatprep.mubr.f32.mxu0 %v487
    %654 = vmatmul.mubr.f32.gmra.mrb[0].mxu0 %v486
    %v655 = vpop.f32.mrb[0].mxu0
    %v656 = vadd.f32 %v540, %v655
    %v657 = vpop.f32.mrb[0].mxu0
    %v658 = vadd.f32 %v544, %v657
    %659 = vmatprep.mubr.f32.mxu0 %v489
    %660 = vmatmul.mubr.f32.gmra.mrb[0].mxu0 %v488
    %v661 = vpop.f32.mrb[0].mxu0
    %v662 = vadd.f32 %v540, %v661
    %v663 = vpop.f32.mrb[0].mxu0
    %v664 = vadd.f32 %v544, %v663
    %665 = vmatprep.mubr.f32.mxu0 %v491
    %666 = vmatmul.mubr.f32.gmra.mrb[0].mxu0 %v490
    %v667 = vpop.f32.mrb[0].mxu0
    %v668 = vadd.f32 %v540, %v667
    %v669 = vpop.f32.mrb[0].mxu0
    %v670 = vadd.f32 %v544, %v669
    %671 = vmatprep.mubr.f32.mxu0 %v493
    %672 = vmatmul.mubr.f32.gmra.mrb[0].mxu0 %v492
    %v673 = vpop.f32.mrb[0].mxu0
    %v674 = vadd.f32 %v540, %v673
    %v675 = vpop.f32.mrb[0].mxu0
    %v676 = vadd.f32 %v544, %v675
    %677 = vmatprep.mubr.f32.mxu0 %v495
    %678 = vmatmul.mubr.f32.gmra.mrb[0].mxu0 %v494
    %v679 = vpop.f32.mrb[0].mxu0
    %v680 = vadd.f32 %v540, %v679
    %v681 = vpop.f32.mrb[0].mxu0
    %v682 = vadd.f32 %v544, %v681
    %683 = vmatprep.mubr.f32.mxu0 %v497
    %684 = vmatmul.mubr.f32.gmra.mrb[0].mxu0 %v496
    %v685 = vpop.f32.mrb[0].mxu0
    %v686 = vadd.f32 %v540, %v685
    %v687 = vpop.f32.mrb[0].mxu0
    %v688 = vadd.f32 %v544, %v687
    %689 = vmatprep.mubr.f32.mxu0 %v499
    %690 = vmatmul.mubr.f32.gmra.mrb[0].mxu0 %v498
    %v691 = vpop.f32.mrb[0].mxu0
    %v692 = vadd.f32 %v540, %v691
    %v693 = vpop.f32.mrb[0].mxu0
    %v694 = vadd.f32 %v544, %v693
    %695 = vmatprep.mubr.f32.mxu0 %v501
    %696 = vmatmul.mubr.f32.gmra.mrb[0].mxu0 %v500
    %v697 = vpop.f32.mrb[0].mxu0
    %v698 = vadd.f32 %v540, %v697
    %v699 = vpop.f32.mrb[0].mxu0
    %v700 = vadd.f32 %v544, %v699
    %701 = vmatprep.mubr.f32.mxu0 %v503
    %702 = vmatmul.mubr.f32.gmra.mrb[0].mxu0 %v502
    %v703 = vpop.f32.mrb[0].mxu0
    %v704 = vadd.f32 %v540, %v703
    %v705 = vpop.f32.mrb[0].mxu0
    %v706 = vadd.f32 %v544, %v705
    %707 = vmatprep.mubr.f32.mxu0 %v505
    %708 = vmatmul.mubr.f32.gmra.mrb[0].mxu0 %v504
    %v709 = vpop.f32.mrb[0].mxu0
    %v710 = vadd.f32 %v540, %v709
    %v711 = vpop.f32.mrb[0].mxu0
    %v712 = vadd.f32 %v544, %v711
    %713 = vmatprep.mubr.f32.mxu0 %v507
    %714 = vmatmul.mubr.f32.gmra.mrb[0].mxu0 %v506
    %v715 = vpop.f32.mrb[0].mxu0
    %v716 = vadd.f32 %v540, %v715
    %v717 = vpop.f32.mrb[0].mxu0
    %v718 = vadd.f32 %v544, %v717
    %719 = vmatprep.mubr.f32.mxu0 %v509
    %720 = vmatmul.mubr.f32.gmra.mrb[0].mxu0 %v508
    %v721 = vpop.f32.mrb[0].mxu0
    %v722 = vadd.f32 %v540, %v721
    %v723 = vpop.f32.mrb[0].mxu0
    %v724 = vadd.f32 %v544, %v723
    %725 = vmatprep.mubr.f32.mxu0 %v511
    %726 = vmatmul.mubr.f32.gmra.mrb[0].mxu0 %v510
    %v727 = vpop.f32.mrb[0].mxu0
    %v728 = vadd.f32 %v540, %v727
    %v729 = vpop.f32.mrb[0].mxu0
    %v730 = vadd.f32 %v544, %v729
    %731 = vmatprep.mubr.f32.mxu0 %v513
    %732 = vmatmul.mubr.f32.gmra.mrb[0].mxu0 %v512
    %v733 = vpop.f32.mrb[0].mxu0
    %v734 = vadd.f32 %v540, %v733
    %v735 = vpop.f32.mrb[0].mxu0
    %v736 = vadd.f32 %v544, %v735
    %737 = vmatprep.mubr.f32.mxu0 %v515
    %738 = vmatmul.mubr.f32.gmra.mrb[0].mxu0 %v514
    %v739 = vpop.f32.mrb[0].mxu0
    %v740 = vadd.f32 %v540, %v739
    %v741 = vpop.f32.mrb[0].mxu0
    %v742 = vadd.f32 %v544, %v741
    %743 = vmatprep.mubr.f32.mxu0 %v517
    %744 = vmatmul.mubr.f32.gmra.mrb[0].mxu0 %v516
    %v745 = vpop.f32.mrb[0].mxu0
    %v746 = vadd.f32 %v540, %v745
    %v747 = vpop.f32.mrb[0].mxu0
    %v748 = vadd.f32 %v544, %v747
    %749 = vmatprep.mubr.f32.mxu0 %v519
    %750 = vmatmul.mubr.f32.gmra.mrb[0].mxu0 %v518
    %v751 = vpop.f32.mrb[0].mxu0
    %v752 = vadd.f32 %v540, %v751
    %v753 = vpop.f32.mrb[0].mxu0
    %v754 = vadd.f32 %v544, %v753
    %755 = vmatprep.mubr.f32.mxu0 %v521
    %756 = vmatmul.mubr.f32.gmra.mrb[0].mxu0 %v520
    %v757 = vpop.f32.mrb[0].mxu0
    %v758 = vadd.f32 %v540, %v757
    %v759 = vpop.f32.mrb[0].mxu0
    %v760 = vadd.f32 %v544, %v759
    %761 = vmatprep.mubr.f32.mxu0 %v523
    %762 = vmatmul.mubr.f32.gmra.mrb[0].mxu0 %v522
    %v763 = vpop.f32.mrb[0].mxu0
    %v764 = vadd.f32 %v540, %v763
    %v765 = vpop.f32.mrb[0].mxu0
    %v766 = vadd.f32 %v544, %v765
    %767 = vmatprep.mubr.f32.mxu0 %v525
    %768 = vmatmul.mubr.f32.gmra.mrb[0].mxu0 %v524
    %v769 = vpop.f32.mrb[0].mxu0
    %v770 = vadd.f32 %v540, %v769
    %v771 = vpop.f32.mrb[0].mxu0
    %v772 = vadd.f32 %v544, %v771
    %773 = vmatprep.mubr.f32.mxu0 %v527
    %774 = vmatmul.mubr.f32.gmra.mrb[0].mxu0 %v526
    %v775 = vpop.f32.mrb[0].mxu0
    %v776 = vadd.f32 %v540, %v775
    %v777 = vpop.f32.mrb[0].mxu0
    %v778 = vadd.f32 %v544, %v777
    %779 = vmatprep.mubr.f32.mxu0 %v529
    %780 = vmatmul.mubr.f32.gmra.mrb[0].mxu0 %v528
    %v781 = vpop.f32.mrb[0].mxu0
    %v782 = vadd.f32 %v540, %v781
    %v783 = vpop.f32.mrb[0].mxu0
    %v784 = vadd.f32 %v544, %v783
    %785 = vmatprep.mubr.f32.mxu0 %v531
    %786 = vmatmul.mubr.f32.gmra.mrb[0].mxu0 %v530
    %v787 = vpop.f32.mrb[0].mxu0
    %v788 = vadd.f32 %v540, %v787
    %v789 = vpop.f32.mrb[0].mxu0
    %v790 = vadd.f32 %v544, %v789
    %791 = vmatprep.mubr.f32.mxu0 %v533
    %792 = vmatmul.mubr.f32.gmra.mrb[0].mxu0 %v532
    %v793 = vpop.f32.mrb[0].mxu0
    %v794 = vadd.f32 %v540, %v793
    %v795 = vpop.f32.mrb[0].mxu0
    %v796 = vadd.f32 %v544, %v795
    %797 = vmatprep.mubr.f32.mxu0 %v535
    %798 = vmatmul.mubr.f32.gmra.mrb[0].mxu0 %v534
    %v799 = vpop.f32.mrb[0].mxu0
    %v800 = vadd.f32 %v540, %v799
    %v801 = vpop.f32.mrb[0].mxu0
    %v802 = vadd.f32 %v544, %v801
    %803 = vdwg.mxu0
    %v804 = vmax.f32 %v614, 0.0
    %v805 = vmax.f32 %v616, 0.0
    %v806 = vmax.f32 %v620, 0.0
    %v807 = vmax.f32 %v622, 0.0
    %v808 = vmax.f32 %v626, 0.0
    %v809 = vmax.f32 %v628, 0.0
    %v810 = vmax.f32 %v632, 0.0
    %v811 = vmax.f32 %v634, 0.0
    %v812 = vmax.f32 %v638, 0.0
    %v813 = vmax.f32 %v640, 0.0
    %v814 = vmax.f32 %v644, 0.0
    %v815 = vmax.f32 %v646, 0.0
    %v816 = vmax.f32 %v650, 0.0
    %v817 = vmax.f32 %v652, 0.0
    %v818 = vmax.f32 %v656, 0.0
    %v819 = vmax.f32 %v658, 0.0
    %v820 = vmax.f32 %v662, 0.0
    %v821 = vmax.f32 %v664, 0.0
    %v822 = vmax.f32 %v668, 0.0
    %v823 = vmax.f32 %v670, 0.0
    %v824 = vmax.f32 %v674, 0.0
    %v825 = vmax.f32 %v676, 0.0
    %v826 = vmax.f32 %v680, 0.0
    %v827 = vmax.f32 %v682, 0.0
    %v828 = vmax.f32 %v686, 0.0
    %v829 = vmax.f32 %v688, 0.0
    %v830 = vmax.f32 %v692, 0.0
    %v831 = vmax.f32 %v694, 0.0
    %v832 = vmax.f32 %v698, 0.0
    %v833 = vmax.f32 %v700, 0.0
    %v834 = vmax.f32 %v704, 0.0
    %v835 = vmax.f32 %v706, 0.0
    %v836 = vmax.f32 %v710, 0.0
    %v837 = vmax.f32 %v712, 0.0
    %v838 = vmax.f32 %v716, 0.0
    %v839 = vmax.f32 %v718, 0.0
    %v840 = vmax.f32 %v722, 0.0
    %v841 = vmax.f32 %v724, 0.0
    %v842 = vmax.f32 %v728, 0.0
    %v843 = vmax.f32 %v730, 0.0
    %v844 = vmax.f32 %v734, 0.0
    %v845 = vmax.f32 %v736, 0.0
    %v846 = vmax.f32 %v740, 0.0
    %v847 = vmax.f32 %v742, 0.0
    %v848 = vmax.f32 %v746, 0.0
    %v849 = vmax.f32 %v748, 0.0
    %v850 = vmax.f32 %v752, 0.0
    %v851 = vmax.f32 %v754, 0.0
    %v852 = vmax.f32 %v758, 0.0
    %v853 = vmax.f32 %v760, 0.0
    %v854 = vmax.f32 %v764, 0.0
    %v855 = vmax.f32 %v766, 0.0
    %v856 = vmax.f32 %v770, 0.0
    %v857 = vmax.f32 %v772, 0.0
    %v858 = vmax.f32 %v776, 0.0
    %v859 = vmax.f32 %v778, 0.0
    %v860 = vmax.f32 %v782, 0.0
    %v861 = vmax.f32 %v784, 0.0
    %v862 = vmax.f32 %v788, 0.0
    %v863 = vmax.f32 %v790, 0.0
    %v864 = vmax.f32 %v794, 0.0
    %v865 = vmax.f32 %v796, 0.0
    %v866 = vmax.f32 %v800, 0.0
    %v867 = vmax.f32 %v802, 0.0
    %v869 = vlaneseq
    %v870 = vshrl.u32 %v869, 7
    %v871 = vsub.s32 0, %v870
    %v872 = vrot.slane %v171, %v871
    %874 = vmatprep.subr.mxu0 0.0
    %875 = vmatpush1.msra.mxu0 %v137
    %876 = vmatprep.subr.mxu0 0.0
    %877 = vmatpush1.msra.mxu0 %v138
    %878 = vmatprep.subr.mxu0 0.0
    %879 = vmatpush1.msra.mxu0 %v139
    %880 = vmatprep.subr.mxu0 0.0
    %881 = vmatpush1.msra.mxu0 %v140
    %882 = vmatprep.subr.mxu0 0.0
    %883 = vmatpush1.msra.mxu0 %v141
    %884 = vmatprep.subr.mxu0 0.0
    %885 = vmatpush1.msra.mxu0 %v142
    %886 = vmatprep.subr.mxu0 0.0
    %887 = vmatpush1.msra.mxu0 %v143
    %888 = vmatprep.subr.mxu0 0.0
    %889 = vmatpush1.msra.mxu0 %v144
    %890 = vmatprep.subr.mxu0 0.0
    %891 = vmatpush1.msra.mxu0 %v145
    %892 = vmatprep.subr.mxu0 0.0
    %893 = vmatpush1.msra.mxu0 %v146
    %894 = vmatprep.subr.mxu0 0.0
    %895 = vmatpush1.msra.mxu0 %v147
    %896 = vmatprep.subr.mxu0 0.0
    %897 = vmatpush1.msra.mxu0 %v148
    %898 = vmatprep.subr.mxu0 0.0
    %899 = vmatpush1.msra.mxu0 %v149
    %900 = vmatprep.subr.mxu0 0.0
    %901 = vmatpush1.msra.mxu0 %v150
    %902 = vmatprep.subr.mxu0 0.0
    %903 = vmatpush1.msra.mxu0 %v151
    %904 = vmatprep.subr.mxu0 0.0
    %905 = vmatpush1.msra.mxu0 %v152
    %906 = vmatprep.subr.mxu0 0.0
    %907 = vmatpush1.msra.mxu0 %v153
    %908 = vmatprep.subr.mxu0 0.0
    %909 = vmatpush1.msra.mxu0 %v154
    %910 = vmatprep.subr.mxu0 0.0
    %911 = vmatpush1.msra.mxu0 %v155
    %912 = vmatprep.subr.mxu0 0.0
    %913 = vmatpush1.msra.mxu0 %v156
    %914 = vmatprep.subr.mxu0 0.0
    %915 = vmatpush1.msra.mxu0 %v157
    %916 = vmatprep.subr.mxu0 0.0
    %917 = vmatpush1.msra.mxu0 %v158
    %918 = vmatprep.subr.mxu0 0.0
    %919 = vmatpush1.msra.mxu0 %v159
    %920 = vmatprep.subr.mxu0 0.0
    %921 = vmatpush1.msra.mxu0 %v160
    %922 = vmatprep.subr.mxu0 0.0
    %923 = vmatpush1.msra.mxu0 %v161
    %924 = vmatprep.subr.mxu0 0.0
    %925 = vmatpush1.msra.mxu0 %v162
    %926 = vmatprep.subr.mxu0 0.0
    %927 = vmatpush1.msra.mxu0 %v163
    %928 = vmatprep.subr.mxu0 0.0
    %929 = vmatpush1.msra.mxu0 %v164
    %930 = vmatprep.subr.mxu0 0.0
    %931 = vmatpush1.msra.mxu0 %v165
    %932 = vmatprep.subr.mxu0 0.0
    %933 = vmatpush1.msra.mxu0 %v166
    %934 = vmatprep.subr.mxu0 0.0
    %935 = vmatpush1.msra.mxu0 %v167
    %936 = vmatprep.subr.mxu0 0.0
    %937 = vmatpush1.msra.mxu0 %v168
    %938 = vmatprep.mubr.f32.mxu0 %v805
    %939 = vmatmul.mubr.f32.gmra.mrb[0].mxu0 %v804
    %v940 = vpop.f32.mrb[0].mxu0
    %v941 = vadd.f32 %v872, %v940
    %v942 = vpop.f32.mrb[0].mxu0
    %943 = vmatprep.mubr.f32.mxu0 %v807
    %944 = vmatmul.mubr.f32.gmra.mrb[0].mxu0 %v806
    %v945 = vpop.f32.mrb[0].mxu0
    %v946 = vadd.f32 %v872, %v945
    %v947 = vpop.f32.mrb[0].mxu0
    %948 = vmatprep.mubr.f32.mxu0 %v809
    %949 = vmatmul.mubr.f32.gmra.mrb[0].mxu0 %v808
    %v950 = vpop.f32.mrb[0].mxu0
    %v951 = vadd.f32 %v872, %v950
    %v952 = vpop.f32.mrb[0].mxu0
    %953 = vmatprep.mubr.f32.mxu0 %v811
    %954 = vmatmul.mubr.f32.gmra.mrb[0].mxu0 %v810
    %v955 = vpop.f32.mrb[0].mxu0
    %v956 = vadd.f32 %v872, %v955
    %v957 = vpop.f32.mrb[0].mxu0
    %958 = vmatprep.mubr.f32.mxu0 %v813
    %959 = vmatmul.mubr.f32.gmra.mrb[0].mxu0 %v812
    %v960 = vpop.f32.mrb[0].mxu0
    %v961 = vadd.f32 %v872, %v960
    %v962 = vpop.f32.mrb[0].mxu0
    %963 = vmatprep.mubr.f32.mxu0 %v815
    %964 = vmatmul.mubr.f32.gmra.mrb[0].mxu0 %v814
    %v965 = vpop.f32.mrb[0].mxu0
    %v966 = vadd.f32 %v872, %v965
    %v967 = vpop.f32.mrb[0].mxu0
    %968 = vmatprep.mubr.f32.mxu0 %v817
    %969 = vmatmul.mubr.f32.gmra.mrb[0].mxu0 %v816
    %v970 = vpop.f32.mrb[0].mxu0
    %v971 = vadd.f32 %v872, %v970
    %v972 = vpop.f32.mrb[0].mxu0
    %973 = vmatprep.mubr.f32.mxu0 %v819
    %974 = vmatmul.mubr.f32.gmra.mrb[0].mxu0 %v818
    %v975 = vpop.f32.mrb[0].mxu0
    %v976 = vadd.f32 %v872, %v975
    %v977 = vpop.f32.mrb[0].mxu0
    %978 = vmatprep.mubr.f32.mxu0 %v821
    %979 = vmatmul.mubr.f32.gmra.mrb[0].mxu0 %v820
    %v980 = vpop.f32.mrb[0].mxu0
    %v981 = vadd.f32 %v872, %v980
    %v982 = vpop.f32.mrb[0].mxu0
    %983 = vmatprep.mubr.f32.mxu0 %v823
    %984 = vmatmul.mubr.f32.gmra.mrb[0].mxu0 %v822
    %v985 = vpop.f32.mrb[0].mxu0
    %v986 = vadd.f32 %v872, %v985
    %v987 = vpop.f32.mrb[0].mxu0
    %988 = vmatprep.mubr.f32.mxu0 %v825
    %989 = vmatmul.mubr.f32.gmra.mrb[0].mxu0 %v824
    %v990 = vpop.f32.mrb[0].mxu0
    %v991 = vadd.f32 %v872, %v990
    %v992 = vpop.f32.mrb[0].mxu0
    %993 = vmatprep.mubr.f32.mxu0 %v827
    %994 = vmatmul.mubr.f32.gmra.mrb[0].mxu0 %v826
    %v995 = vpop.f32.mrb[0].mxu0
    %v996 = vadd.f32 %v872, %v995
    %v997 = vpop.f32.mrb[0].mxu0
    %998 = vmatprep.mubr.f32.mxu0 %v829
    %999 = vmatmul.mubr.f32.gmra.mrb[0].mxu0 %v828
    %v1000 = vpop.f32.mrb[0].mxu0
    %v1001 = vadd.f32 %v872, %v1000
    %v1002 = vpop.f32.mrb[0].mxu0
    %1003 = vmatprep.mubr.f32.mxu0 %v831
    %1004 = vmatmul.mubr.f32.gmra.mrb[0].mxu0 %v830
    %v1005 = vpop.f32.mrb[0].mxu0
    %v1006 = vadd.f32 %v872, %v1005
    %v1007 = vpop.f32.mrb[0].mxu0
    %1008 = vmatprep.mubr.f32.mxu0 %v833
    %1009 = vmatmul.mubr.f32.gmra.mrb[0].mxu0 %v832
    %v1010 = vpop.f32.mrb[0].mxu0
    %v1011 = vadd.f32 %v872, %v1010
    %v1012 = vpop.f32.mrb[0].mxu0
    %1013 = vmatprep.mubr.f32.mxu0 %v835
    %1014 = vmatmul.mubr.f32.gmra.mrb[0].mxu0 %v834
    %v1015 = vpop.f32.mrb[0].mxu0
    %v1016 = vadd.f32 %v872, %v1015
    %v1017 = vpop.f32.mrb[0].mxu0
    %1018 = vmatprep.mubr.f32.mxu0 %v837
    %1019 = vmatmul.mubr.f32.gmra.mrb[0].mxu0 %v836
    %v1020 = vpop.f32.mrb[0].mxu0
    %v1021 = vadd.f32 %v872, %v1020
    %v1022 = vpop.f32.mrb[0].mxu0
    %1023 = vmatprep.mubr.f32.mxu0 %v839
    %1024 = vmatmul.mubr.f32.gmra.mrb[0].mxu0 %v838
    %v1025 = vpop.f32.mrb[0].mxu0
    %v1026 = vadd.f32 %v872, %v1025
    %v1027 = vpop.f32.mrb[0].mxu0
    %1028 = vmatprep.mubr.f32.mxu0 %v841
    %1029 = vmatmul.mubr.f32.gmra.mrb[0].mxu0 %v840
    %v1030 = vpop.f32.mrb[0].mxu0
    %v1031 = vadd.f32 %v872, %v1030
    %v1032 = vpop.f32.mrb[0].mxu0
    %1033 = vmatprep.mubr.f32.mxu0 %v843
    %1034 = vmatmul.mubr.f32.gmra.mrb[0].mxu0 %v842
    %v1035 = vpop.f32.mrb[0].mxu0
    %v1036 = vadd.f32 %v872, %v1035
    %v1037 = vpop.f32.mrb[0].mxu0
    %1038 = vmatprep.mubr.f32.mxu0 %v845
    %1039 = vmatmul.mubr.f32.gmra.mrb[0].mxu0 %v844
    %v1040 = vpop.f32.mrb[0].mxu0
    %v1041 = vadd.f32 %v872, %v1040
    %v1042 = vpop.f32.mrb[0].mxu0
    %1043 = vmatprep.mubr.f32.mxu0 %v847
    %1044 = vmatmul.mubr.f32.gmra.mrb[0].mxu0 %v846
    %v1045 = vpop.f32.mrb[0].mxu0
    %v1046 = vadd.f32 %v872, %v1045
    %v1047 = vpop.f32.mrb[0].mxu0
    %1048 = vmatprep.mubr.f32.mxu0 %v849
    %1049 = vmatmul.mubr.f32.gmra.mrb[0].mxu0 %v848
    %v1050 = vpop.f32.mrb[0].mxu0
    %v1051 = vadd.f32 %v872, %v1050
    %v1052 = vpop.f32.mrb[0].mxu0
    %1053 = vmatprep.mubr.f32.mxu0 %v851
    %1054 = vmatmul.mubr.f32.gmra.mrb[0].mxu0 %v850
    %v1055 = vpop.f32.mrb[0].mxu0
    %v1056 = vadd.f32 %v872, %v1055
    %v1057 = vpop.f32.mrb[0].mxu0
    %1058 = vmatprep.mubr.f32.mxu0 %v853
    %1059 = vmatmul.mubr.f32.gmra.mrb[0].mxu0 %v852
    %v1060 = vpop.f32.mrb[0].mxu0
    %v1061 = vadd.f32 %v872, %v1060
    %v1062 = vpop.f32.mrb[0].mxu0
    %1063 = vmatprep.mubr.f32.mxu0 %v855
    %1064 = vmatmul.mubr.f32.gmra.mrb[0].mxu0 %v854
    %v1065 = vpop.f32.mrb[0].mxu0
    %v1066 = vadd.f32 %v872, %v1065
    %v1067 = vpop.f32.mrb[0].mxu0
    %1068 = vmatprep.mubr.f32.mxu0 %v857
    %1069 = vmatmul.mubr.f32.gmra.mrb[0].mxu0 %v856
    %v1070 = vpop.f32.mrb[0].mxu0
    %v1071 = vadd.f32 %v872, %v1070
    %v1072 = vpop.f32.mrb[0].mxu0
    %1073 = vmatprep.mubr.f32.mxu0 %v859
    %1074 = vmatmul.mubr.f32.gmra.mrb[0].mxu0 %v858
    %v1075 = vpop.f32.mrb[0].mxu0
    %v1076 = vadd.f32 %v872, %v1075
    %v1077 = vpop.f32.mrb[0].mxu0
    %1078 = vmatprep.mubr.f32.mxu0 %v861
    %1079 = vmatmul.mubr.f32.gmra.mrb[0].mxu0 %v860
    %v1080 = vpop.f32.mrb[0].mxu0
    %v1081 = vadd.f32 %v872, %v1080
    %v1082 = vpop.f32.mrb[0].mxu0
    %1083 = vmatprep.mubr.f32.mxu0 %v863
    %1084 = vmatmul.mubr.f32.gmra.mrb[0].mxu0 %v862
    %v1085 = vpop.f32.mrb[0].mxu0
    %v1086 = vadd.f32 %v872, %v1085
    %v1087 = vpop.f32.mrb[0].mxu0
    %1088 = vmatprep.mubr.f32.mxu0 %v865
    %1089 = vmatmul.mubr.f32.gmra.mrb[0].mxu0 %v864
    %v1090 = vpop.f32.mrb[0].mxu0
    %v1091 = vadd.f32 %v872, %v1090
    %v1092 = vpop.f32.mrb[0].mxu0
    %1093 = vmatprep.mubr.f32.mxu0 %v867
    %1094 = vmatmul.mubr.f32.gmra.mrb[0].mxu0 %v866
    %v1095 = vpop.f32.mrb[0].mxu0
    %v1096 = vadd.f32 %v872, %v1095
    %v1097 = vpop.f32.mrb[0].mxu0
    %1098 = vdwg.mxu0
    %vm1099 = vcmask 261120
    %1100 = vst.msk [vmem:[#allocation5] sm:$0xff] %vm1099, %v941
    %1101 = vst.msk [vmem:[#allocation5 + $0x8] sm:$0xff] %vm1099, %v946
    %1102 = vst.msk [vmem:[#allocation5 + $0x10] sm:$0xff] %vm1099, %v951
    %1103 = vst.msk [vmem:[#allocation5 + $0x18] sm:$0xff] %vm1099, %v956
    %1104 = vst.msk [vmem:[#allocation5 + $0x20] sm:$0xff] %vm1099, %v961
    %1105 = vst.msk [vmem:[#allocation5 + $0x28] sm:$0xff] %vm1099, %v966
    %1106 = vst.msk [vmem:[#allocation5 + $0x30] sm:$0xff] %vm1099, %v971
    %1107 = vst.msk [vmem:[#allocation5 + $0x38] sm:$0xff] %vm1099, %v976
    %1108 = vst.msk [vmem:[#allocation5 + $0x40] sm:$0xff] %vm1099, %v981
    %1109 = vst.msk [vmem:[#allocation5 + $0x48] sm:$0xff] %vm1099, %v986
    %1110 = vst.msk [vmem:[#allocation5 + $0x50] sm:$0xff] %vm1099, %v991
    %1111 = vst.msk [vmem:[#allocation5 + $0x58] sm:$0xff] %vm1099, %v996
    %1112 = vst.msk [vmem:[#allocation5 + $0x60] sm:$0xff] %vm1099, %v1001
    %1113 = vst.msk [vmem:[#allocation5 + $0x68] sm:$0xff] %vm1099, %v1006
    %1114 = vst.msk [vmem:[#allocation5 + $0x70] sm:$0xff] %vm1099, %v1011
    %1115 = vst.msk [vmem:[#allocation5 + $0x78] sm:$0xff] %vm1099, %v1016
    %1116 = vst.msk [vmem:[#allocation5 + $0x80] sm:$0xff] %vm1099, %v1021
    %1117 = vst.msk [vmem:[#allocation5 + $0x88] sm:$0xff] %vm1099, %v1026
    %1118 = vst.msk [vmem:[#allocation5 + $0x90] sm:$0xff] %vm1099, %v1031
    %1119 = vst.msk [vmem:[#allocation5 + $0x98] sm:$0xff] %vm1099, %v1036
    %1120 = vst.msk [vmem:[#allocation5 + $0xa0] sm:$0xff] %vm1099, %v1041
    %1121 = vst.msk [vmem:[#allocation5 + $0xa8] sm:$0xff] %vm1099, %v1046
    %1122 = vst.msk [vmem:[#allocation5 + $0xb0] sm:$0xff] %vm1099, %v1051
    %1123 = vst.msk [vmem:[#allocation5 + $0xb8] sm:$0xff] %vm1099, %v1056
    %1124 = vst.msk [vmem:[#allocation5 + $0xc0] sm:$0xff] %vm1099, %v1061
    %1125 = vst.msk [vmem:[#allocation5 + $0xc8] sm:$0xff] %vm1099, %v1066
    %1126 = vst.msk [vmem:[#allocation5 + $0xd0] sm:$0xff] %vm1099, %v1071
    %1127 = vst.msk [vmem:[#allocation5 + $0xd8] sm:$0xff] %vm1099, %v1076
    %1128 = vst.msk [vmem:[#allocation5 + $0xe0] sm:$0xff] %vm1099, %v1081
    %1129 = vst.msk [vmem:[#allocation5 + $0xe8] sm:$0xff] %vm1099, %v1086
    %1130 = vst.msk [vmem:[#allocation5 + $0xf0] sm:$0xff] %vm1099, %v1091
    %1131 = vst.msk [vmem:[#allocation5 + $0xf8] sm:$0xff] %vm1099, %v1096
    // Predicated region
    $region34: #{tpu_custom_call.1} parent=1 // pred_check
      _
    $region35: #{tpu_custom_call.1} parent=1 // pred_check_branch
      %1133 = sbr.rel (0) target = $region37
    $region36: #{tpu_custom_call.1} parent=1 // pred_region
      %s1135 = ssub.s32 4096, 256
      %1136 = vsyncadd [#allocation4], %s1135
      %s1137 = sshll.u32 [#allocation5], 4
      %s1138 = int_to_ptr.vmem [resolvable:$true] %s1137
      %1143 = dma.vmem_to_hbm [thread:$0]  %s1138, 256, %s7, [#allocation4], 128, 128, 8
    $region37: #{tpu_custom_call.1} parent=1 // pred_fallthru
      _
    // Predicated region
    $region38: #{tpu_custom_call.1} parent=1 // pred_check
      _
    $region39: #{tpu_custom_call.1} parent=1 // pred_check_branch
      %1145 = sbr.rel (0) target = $region41
    $region40: #{tpu_custom_call.1} parent=1 // pred_region
      %1146 = dma.done [#allocation4], 4096
    $region41: #{tpu_custom_call.1} parent=1 // pred_fallthru
      _
    %1147 = vsyncpa [#allocation3], 1
    %1148 = vsyncpa [#allocation4], 1

</llo_original>
